<compile_context>
chip_gen: v7x
topology: tpu7x:2x2x1
jax: 0.10.0
libtpu: 0.0.40
codegen_flags: <defaults>
</compile_context>

<pallas_src>
import functools
import math

import jax
import jax.numpy as jnp
from jax.experimental import pallas as pl
from jax.experimental.pallas import tpu as pltpu

# Conservative VMEM budget for the resident table + double-buffered I/O tiles:
# fits v7x (64 MiB physical) as well as v5e/v6e (128 MiB).
_VMEM_BUDGET_BYTES = 48 * 1024 * 1024


def _round_up(x: int, m: int) -> int:
    return (x + m - 1) // m * m


# ---------------------------------------------------------------------------
# Kernel A (small vocab): gather expressed as a one-hot matmul on the MXU.
# The whole (TM, d_model) tile is produced and stored as one dense block — no
# per-token loads and no single-sublane masked row stores.
# ---------------------------------------------------------------------------
def _embed_onehot_kernel(ids_ref, lut_ref, out_ref, *, scale, vocab):
    ids = ids_ref[...]                                   # (TM, 1) int32, VMEM
    tm = ids.shape[0]
    vocab_iota = jax.lax.broadcasted_iota(jnp.int32, (tm, vocab), 1)
    onehot = jnp.where(ids == vocab_iota, jnp.float32(1.0), jnp.float32(0.0))
    # HIGHEST keeps f32 accuracy through the MXU, so the selection is exact;
    # the sqrt(d_model) scale is applied afterwards on the VPU in f32.
    emb = jnp.dot(onehot, lut_ref[...].astype(jnp.float32),
                  preferred_element_type=jnp.float32,
                  precision=jax.lax.Precision.HIGHEST)
    out_ref[...] = (emb * scale).astype(out_ref.dtype)


# ---------------------------------------------------------------------------
# Kernel B (general, table still fits VMEM): the table stays resident in VMEM
# across the whole grid, token ids are scalar-prefetched into SMEM, and TM rows
# are gathered per grid step with dynamic sublane slices. No per-token grid
# overhead and no HBM latency on the gather itself.
# ---------------------------------------------------------------------------
def _embed_gather_kernel(ids_ref, lut_ref, out_ref, *, scale):
    tm = out_ref.shape[0]
    base = pl.program_id(0) * tm

    def body(t, carry):
        tok = ids_ref[base + t]                          # scalar read from SMEM
        row = lut_ref[pl.ds(tok, 1), :].astype(jnp.float32) * scale
        out_ref[pl.ds(t, 1), :] = row.astype(out_ref.dtype)
        return carry

    jax.lax.fori_loop(0, tm, body, 0)


def embeddings_forward(token_ids: jax.Array, lut: jax.Array, *,
                       tile_tokens: int = 512,
                       onehot_max_vocab: int = 2048,
                       method: str = "auto") -> jax.Array:
    """Pallas equivalent of Embeddings.forward: lut[x] * sqrt(d_model)."""
    vocab, d_model = lut.shape
    scale = float(math.sqrt(d_model))
    orig_shape = tuple(token_ids.shape)
    n = int(token_ids.size)
    flat = token_ids.reshape(-1).astype(jnp.int32)

    # Token tile: multiple of 8 sublanes, padded token count multiple of tile.
    tm = _round_up(min(int(tile_tokens), max(n, 8)), 8)
    n_pad = _round_up(n, tm)
    if n_pad != n:
        flat = jnp.pad(flat, (0, n_pad - n))             # pad with token 0
    num_tiles = n_pad // tm

    itemsize = lut.dtype.itemsize
    lut_bytes = vocab * d_model * itemsize
    # VMEM need: 2x table (buffering), double-buffered output tiles, one-hot
    # temporary, ids tiles, plus slack.
    need = (2 * lut_bytes + 2 * tm * d_model * itemsize + tm * vocab * 4
            + 2 * tm * 4 + (2 << 20))
    if need > _VMEM_BUDGET_BYTES:
        # TODO(synk): add a manual batched HBM-DMA gather path (lut with
        # memory_space=pl.ANY + many in-flight pltpu.make_async_copy row
        # copies) for embedding tables too large to keep resident in VMEM.
        raise NotImplementedError(
            "Embedding table too large for the VMEM-resident kernel.")

    if method == "auto":
        method = "onehot" if vocab <= onehot_max_vocab else "gather"
    if method not in ("onehot", "gather"):
        raise ValueError(f"unknown method: {method}")

    compiler_params = pltpu.CompilerParams(
        dimension_semantics=("parallel",),               # independent token tiles
        vmem_limit_bytes=int(min(max(need, 16 << 20), 56 << 20)),
    )

    out_shape = jax.ShapeDtypeStruct((n_pad, d_model), lut.dtype)
    # Lane-dense output: full d_model last dim, TM sublanes per block.
    # (For d_model < 128 one could additionally pack 128/d_model tokens per
    # lane row; omitted here for clarity.)
    out_bspec = pl.BlockSpec((tm, d_model), lambda i, *_: (i, 0))
    # Full-array block + constant index_map => table stays resident in VMEM.
    lut_bspec = pl.BlockSpec((vocab, d_model), lambda i, *_: (0, 0))
    bytes_accessed = int(n_pad * 4 + lut_bytes + n_pad * d_model * itemsize)

    if method == "onehot":
        kernel = functools.partial(_embed_onehot_kernel, scale=scale, vocab=vocab)
        grid_spec = pltpu.PrefetchScalarGridSpec(
            num_scalar_prefetch=0,
            grid=(num_tiles,),
            in_specs=[pl.BlockSpec((tm, 1), lambda i, *_: (i, 0)),  # ids (VMEM)
                      lut_bspec],
            out_specs=out_bspec,
        )
        cost = pl.CostEstimate(flops=2 * n_pad * vocab * d_model,
                               transcendentals=0,
                               bytes_accessed=bytes_accessed)
        out_flat = pl.pallas_call(
            kernel, out_shape=out_shape, grid_spec=grid_spec,
            compiler_params=compiler_params, cost_estimate=cost,
        )(flat.reshape(n_pad, 1), lut)
    else:  # "gather"
        kernel = functools.partial(_embed_gather_kernel, scale=scale)
        grid_spec = pltpu.PrefetchScalarGridSpec(
            num_scalar_prefetch=1,                        # ids -> SMEM
            grid=(num_tiles,),
            in_specs=[lut_bspec],
            out_specs=out_bspec,
        )
        cost = pl.CostEstimate(flops=n_pad * d_model,
                               transcendentals=0,
                               bytes_accessed=bytes_accessed)
        out_flat = pl.pallas_call(
            kernel, out_shape=out_shape, grid_spec=grid_spec,
            compiler_params=compiler_params, cost_estimate=cost,
        )(flat, lut)

    out = out_flat[:n] if n_pad != n else out_flat
    return out.reshape(*orig_shape, d_model)


if __name__ == "__main__":
    # Small shapes consistent with the module's forward pass.
    batch, seq = 2, 8
    vocab, d_model = 50, 32

    key = jax.random.PRNGKey(0)
    k_lut, k_ids = jax.random.split(key)

    # nn.Embedding default init is N(0, 1); reproduce deterministically.
    lut = jax.random.normal(k_lut, (vocab, d_model), dtype=jnp.float32)
    token_ids = jax.random.randint(k_ids, (batch, seq), 0, vocab, dtype=jnp.int32)

    ref = lut[token_ids] * math.sqrt(d_model)

    # Path 1 (auto -> one-hot MXU path for this small vocab).
    out_mm = jax.block_until_ready(embeddings_forward(token_ids, lut, method="auto"))
    assert out_mm.shape == (batch, seq, d_model)
    assert out_mm.dtype == jnp.float32
    assert jnp.allclose(out_mm, ref, atol=1e-4, rtol=1e-4)

    # Path 2 (general VMEM-resident row-gather path; exact f32 arithmetic).
    out_g = jax.block_until_ready(embeddings_forward(token_ids, lut, method="gather"))
    assert out_g.shape == (batch, seq, d_model)
    assert out_g.dtype == jnp.float32
    assert jnp.allclose(out_g, ref, atol=1e-6, rtol=1e-6)

    print("KERNEL_OK")
</pallas_src>

<mosaic_0001>
module attributes {stable_mosaic.version = 11 : i64} {
  func.func @_embed_onehot_kernel(%arg0: i32, %arg1: memref<16x1xi32, #tpu.memory_space<vmem>>, %arg2: memref<50x32xf32, #tpu.memory_space<vmem>>, %arg3: memref<16x32xf32, #tpu.memory_space<vmem>>) attributes {dimension_semantics = [#tpu.dimension_semantics<parallel>], iteration_bounds = array<i64: 1>, scalar_prefetch = 0 : i64, scratch_operands = 0 : i64, tpu.core_type = #tpu.core_type<tc>, window_params = [{transform_indices = @transform_0, window_bounds = array<i64: 16, 1>}, {pipeline_mode = #tpu.pipeline_mode<synchronous>, transform_indices = @transform_1, window_bounds = array<i64: 50, 32>}, {transform_indices = @transform_2, window_bounds = array<i64: 16, 32>}]} {
    %c0 = arith.constant 0 : index
    %c0_0 = arith.constant 0 : index
    %0 = vector.load %arg1[%c0, %c0_0] : memref<16x1xi32, #tpu.memory_space<vmem>>, vector<16x1xi32>
    %1 = tpu.iota {dimensions = array<i32: 1>} : vector<16x50xi32>
    %2 = vector.broadcast %0 : vector<16x1xi32> to vector<16x50xi32>
    %3 = arith.cmpi eq, %2, %1 : vector<16x50xi32>
    %cst = arith.constant 1.000000e+00 : f32
    %cst_1 = arith.constant 0.000000e+00 : f32
    %4 = vector.broadcast %cst : f32 to vector<16x50xf32>
    %5 = vector.broadcast %cst_1 : f32 to vector<16x50xf32>
    %6 = arith.select %3, %4, %5 : vector<16x50xi1>, vector<16x50xf32>
    %c0_2 = arith.constant 0 : index
    %c0_3 = arith.constant 0 : index
    %7 = vector.load %arg2[%c0_2, %c0_3] : memref<50x32xf32, #tpu.memory_space<vmem>>, vector<50x32xf32>
    %cst_4 = arith.constant dense<0.000000e+00> : vector<16x32xf32>
    %8 = tpu.matmul %6, %7, %cst_4 {dimension_numbers = #tpu.dot_dimension_numbers<[1], [0], [0], [1], [0, 0, 1, 1], [], []>, precision = #tpu.contract_precision<fp32>} : vector<16x50xf32>, vector<50x32xf32>, vector<16x32xf32> -> vector<16x32xf32>
    %cst_5 = arith.constant 5.65685415 : f32
    %9 = vector.broadcast %cst_5 : f32 to vector<16x32xf32>
    %10 = arith.mulf %8, %9 : vector<16x32xf32>
    %c0_6 = arith.constant 0 : index
    %c0_7 = arith.constant 0 : index
    %11 = vector.load %arg3[%c0_6, %c0_7] : memref<16x32xf32, #tpu.memory_space<vmem>>, vector<16x32xf32>
    tpu.vector_store %arg3[%c0_6, %c0_7], %10 {strides = array<i32>} : memref<16x32xf32, #tpu.memory_space<vmem>>, vector<16x32xf32>,
    return
  }
  func.func @transform_0(%arg0: i32) -> (i32, i32) {
    %c0_i32 = arith.constant 0 : i32
    %c0_i32_0 = arith.constant 0 : i32
    return %arg0, %c0_i32 : i32, i32
  }
  func.func @transform_1(%arg0: i32) -> (i32, i32) {
    %c0_i32 = arith.constant 0 : i32
    %c0_i32_0 = arith.constant 0 : i32
    %c0_i32_1 = arith.constant 0 : i32
    return %c0_i32, %c0_i32_0 : i32, i32
  }
  func.func @transform_2(%arg0: i32) -> (i32, i32) {
    %c0_i32 = arith.constant 0 : i32
    %c0_i32_0 = arith.constant 0 : i32
    return %arg0, %c0_i32 : i32, i32
  }
}

</mosaic_0001>

<llo_original>
// kernel: tpu_custom_call.1
$region0: #{tpu_custom_call.1}
  #allocation0 [shape = 'u32[]', space=smem, size = 0x4, offset = 0x4, fixed_abs, tag = 'smem constant byte address 0x4 - core index']
  #allocation1 [shape = 'u32[144,128]{1,0:T(1,128)}', space=vmem, size = 0x12000, scoped, tag = 'internal scratch']
  %s0 = inlined_call_operand.vmem [shape: s32[16,1], index: 0, kind: input, shape index: {}]
  %s1 = inlined_call_operand.vmem [shape: f32[50,32], index: 1, kind: input, shape index: {}]
  %s2 = inlined_call_operand.hbm [shape: f32[16,32], index: 2, kind: output, shape index: {}]
  %s3 = sld [smem:[#allocation0]]
  $region18: #{tpu_custom_call.1} parent=0
    _
  %s5 = ssub.s32 1, %s3
  %s6 = scalar_select 0, %s5, %s3
  $region1: #{tpu_custom_call.1} parent=0
    #allocation2 [shape = 'u8[8192]{0}', space=vmem, size = 0x2000, scoped, tag = 'output window, operand 0, single buffered']
    #allocation3 [shape = 's32[1]{0}', space=sflag, size = 0x4, scoped, tag = 'scoped memory for tpu_custom_call.1']
    %7 = vsyncpa [#allocation3], 0
    // Predicated region
    $region2: #{tpu_custom_call.1} parent=1 // pred_check
      _
    $region3: #{tpu_custom_call.1} parent=1 // pred_check_branch
      %9 = sbr.rel (0) target = $region5
    $region4: #{tpu_custom_call.1} parent=1 // pred_region
      _
    $region5: #{tpu_custom_call.1} parent=1 // pred_fallthru
      _
    // Predicated region
    $region6: #{tpu_custom_call.1} parent=1 // pred_check
      _
    $region7: #{tpu_custom_call.1} parent=1 // pred_check_branch
      %11 = sbr.rel (0) target = $region9
    $region8: #{tpu_custom_call.1} parent=1 // pred_region
      _
    $region9: #{tpu_custom_call.1} parent=1 // pred_fallthru
      _
    %v12 = vld [vmem:[%s0] sm:$0xff]
    %v13 = vld [vmem:[%s0 + $0x8] sm:$0xff]
    %v14 = vlaneseq
    %v15 = vand.u32 %v14, 127
    %16 = vset.pattern.permute.xlu0 0
    %17 = vperm.xlu0 %16, %v12
    %v18 = vpop.permute.xlu0 %17
    %19 = vset.pattern.permute.xlu0 0
    %20 = vperm.xlu0 %19, %v13
    %v21 = vpop.permute.xlu0 %20
    %vm22 = vcmp.eq.s32.totalorder %v18, %v15
    %vm23 = vcmp.eq.s32.totalorder %v21, %v15
    %v24 = vsel %vm22, 1.0, 0.0
    %v25 = vsel %vm23, 1.0, 0.0
    %v26 = vld [vmem:[%s1] sm:$0xff]
    %v27 = vld [vmem:[%s1 + $0x8] sm:$0xff]
    %v28 = vld [vmem:[%s1 + $0x10] sm:$0xff]
    %v29 = vld [vmem:[%s1 + $0x18] sm:$0xff]
    %v30 = vld [vmem:[%s1 + $0x20] sm:$0xff]
    %v31 = vld [vmem:[%s1 + $0x28] sm:$0xff]
    %v32 = vld [vmem:[%s1 + $0x30] sm:$0x3]
    %vm33 = vcmask 408576
    %v35 = vsel %vm33, %v24, 0
    %v38 = vsel %vm33, %v25, 0
    %vm40 = vcmask 1041408
    %v42 = vsel %vm40, %v32, 0
    %44 = vmatprep.subr.mxu0 0.0
    %v45 = vand.u32 %v26, 4294901760
    %46 = vmatpush1.msra.mxu0 %v45
    %47 = vmatprep.subr.mxu0 0.0
    %v48 = vand.u32 %v27, 4294901760
    %49 = vmatpush1.msra.mxu0 %v48
    %50 = vmatprep.subr.mxu0 0.0
    %v51 = vand.u32 %v28, 4294901760
    %52 = vmatpush1.msra.mxu0 %v51
    %53 = vmatprep.subr.mxu0 0.0
    %v54 = vand.u32 %v29, 4294901760
    %55 = vmatpush1.msra.mxu0 %v54
    %56 = vmatprep.subr.mxu0 0.0
    %v57 = vand.u32 %v30, 4294901760
    %58 = vmatpush1.msra.mxu0 %v57
    %59 = vmatprep.subr.mxu0 0.0
    %v60 = vand.u32 %v31, 4294901760
    %61 = vmatpush1.msra.mxu0 %v60
    %62 = vmatprep.subr.mxu0 0.0
    %v63 = vand.u32 %v42, 4294901760
    %64 = vmatpush1.msra.mxu0 %v63
    %65 = vmatprep.subr.mxu0 0.0
    %66 = vmatpush1.msra.mxu0 0.0
    %67 = vmatprep.subr.mxu0 0.0
    %68 = vmatpush1.msra.mxu0 0.0
    %69 = vmatprep.subr.mxu0 0.0
    %70 = vmatpush1.msra.mxu0 0.0
    %71 = vmatprep.subr.mxu0 0.0
    %72 = vmatpush1.msra.mxu0 0.0
    %73 = vmatprep.subr.mxu0 0.0
    %74 = vmatpush1.msra.mxu0 0.0
    %75 = vmatprep.subr.mxu0 0.0
    %76 = vmatpush1.msra.mxu0 0.0
    %77 = vmatprep.subr.mxu0 0.0
    %78 = vmatpush1.msra.mxu0 0.0
    %79 = vmatprep.subr.mxu0 0.0
    %80 = vmatpush1.msra.mxu0 0.0
    %81 = vmatprep.subr.mxu0 0.0
    %82 = vmatpush1.msra.mxu0 0.0
    %83 = vmatprep.subr.mxu0 0.0
    %84 = vmatpush1.msra.mxu0 0.0
    %85 = vmatprep.subr.mxu0 0.0
    %86 = vmatpush1.msra.mxu0 0.0
    %87 = vmatprep.subr.mxu0 0.0
    %88 = vmatpush1.msra.mxu0 0.0
    %89 = vmatprep.subr.mxu0 0.0
    %90 = vmatpush1.msra.mxu0 0.0
    %91 = vmatprep.subr.mxu0 0.0
    %92 = vmatpush1.msra.mxu0 0.0
    %93 = vmatprep.subr.mxu0 0.0
    %94 = vmatpush1.msra.mxu0 0.0
    %95 = vmatprep.subr.mxu0 0.0
    %96 = vmatpush1.msra.mxu0 0.0
    %97 = vmatprep.subr.mxu0 0.0
    %98 = vmatpush1.msra.mxu0 0.0
    %99 = vmatprep.subr.mxu0 0.0
    %100 = vmatpush1.msra.mxu0 0.0
    %101 = vmatprep.subr.mxu0 0.0
    %102 = vmatpush1.msra.mxu0 0.0
    %103 = vmatprep.subr.mxu0 0.0
    %104 = vmatpush1.msra.mxu0 0.0
    %105 = vmatprep.subr.mxu0 0.0
    %106 = vmatpush1.msra.mxu0 0.0
    %107 = vmatprep.subr.mxu0 0.0
    %108 = vmatpush1.msra.mxu0 0.0
    %109 = vmatprep.subr.mxu0 0.0
    %110 = vmatpush1.msra.mxu0 0.0
    %111 = vmatprep.subr.mxu0 0.0
    %112 = vmatpush1.msra.mxu0 0.0
    %113 = vmatprep.subr.mxu0 0.0
    %114 = vmatpush1.msra.mxu0 0.0
    %115 = vmatprep.mubr.f32.mxu0 0.0
    %v116 = vand.u32 %v35, 4294901760
    %v117 = vsub.f32 %v35, %v116
    %v118 = vand.u32 %v117, 4294901760
    %v119 = vsub.f32 %v117, %v118
    %v120 = vand.u32 %v119, 4294901760
    %121 = vmatmul.mubr.f32.gmra.mrb[0].mxu0 %v120
    %v122 = vpop.f32.mrb[0].mxu0
    %v123 = vadd.f32 0.0, %v122
    %v124 = vpop.f32.mrb[0].mxu0
    %125 = vmatprep.mubr.f32.mxu0 0.0
    %v126 = vand.u32 %v38, 4294901760
    %v127 = vsub.f32 %v38, %v126
    %v128 = vand.u32 %v127, 4294901760
    %v129 = vsub.f32 %v127, %v128
    %v130 = vand.u32 %v129, 4294901760
    %131 = vmatmul.mubr.f32.gmra.mrb[0].mxu0 %v130
    %v132 = vpop.f32.mrb[0].mxu0
    %v133 = vadd.f32 0.0, %v132
    %v134 = vpop.f32.mrb[0].mxu0
    %135 = vdwg.mxu0
    %136 = vmatprep.subr.mxu0 0.0
    %v137 = vand.u32 %v26, 4294901760
    %v138 = vsub.f32 %v26, %v137
    %v139 = vand.u32 %v138, 4294901760
    %v140 = vsub.f32 %v138, %v139
    %v141 = vand.u32 %v140, 4294901760
    %142 = vmatpush1.msra.mxu0 %v141
    %143 = vmatprep.subr.mxu0 0.0
    %v144 = vand.u32 %v27, 4294901760
    %v145 = vsub.f32 %v27, %v144
    %v146 = vand.u32 %v145, 4294901760
    %v147 = vsub.f32 %v145, %v146
    %v148 = vand.u32 %v147, 4294901760
    %149 = vmatpush1.msra.mxu0 %v148
    %150 = vmatprep.subr.mxu0 0.0
    %v151 = vand.u32 %v28, 4294901760
    %v152 = vsub.f32 %v28, %v151
    %v153 = vand.u32 %v152, 4294901760
    %v154 = vsub.f32 %v152, %v153
    %v155 = vand.u32 %v154, 4294901760
    %156 = vmatpush1.msra.mxu0 %v155
    %157 = vmatprep.subr.mxu0 0.0
    %v158 = vand.u32 %v29, 4294901760
    %v159 = vsub.f32 %v29, %v158
    %v160 = vand.u32 %v159, 4294901760
    %v161 = vsub.f32 %v159, %v160
    %v162 = vand.u32 %v161, 4294901760
    %163 = vmatpush1.msra.mxu0 %v162
    %164 = vmatprep.subr.mxu0 0.0
    %v165 = vand.u32 %v30, 4294901760
    %v166 = vsub.f32 %v30, %v165
    %v167 = vand.u32 %v166, 4294901760
    %v168 = vsub.f32 %v166, %v167
    %v169 = vand.u32 %v168, 4294901760
    %170 = vmatpush1.msra.mxu0 %v169
    %171 = vmatprep.subr.mxu0 0.0
    %v172 = vand.u32 %v31, 4294901760
    %v173 = vsub.f32 %v31, %v172
    %v174 = vand.u32 %v173, 4294901760
    %v175 = vsub.f32 %v173, %v174
    %v176 = vand.u32 %v175, 4294901760
    %177 = vmatpush1.msra.mxu0 %v176
    %178 = vmatprep.subr.mxu0 0.0
    %v179 = vand.u32 %v42, 4294901760
    %v180 = vsub.f32 %v42, %v179
    %v181 = vand.u32 %v180, 4294901760
    %v182 = vsub.f32 %v180, %v181
    %v183 = vand.u32 %v182, 4294901760
    %184 = vmatpush1.msra.mxu0 %v183
    %185 = vmatprep.subr.mxu0 0.0
    %186 = vmatpush1.msra.mxu0 0.0
    %187 = vmatprep.subr.mxu0 0.0
    %188 = vmatpush1.msra.mxu0 0.0
    %189 = vmatprep.subr.mxu0 0.0
    %190 = vmatpush1.msra.mxu0 0.0
    %191 = vmatprep.subr.mxu0 0.0
    %192 = vmatpush1.msra.mxu0 0.0
    %193 = vmatprep.subr.mxu0 0.0
    %194 = vmatpush1.msra.mxu0 0.0
    %195 = vmatprep.subr.mxu0 0.0
    %196 = vmatpush1.msra.mxu0 0.0
    %197 = vmatprep.subr.mxu0 0.0
    %198 = vmatpush1.msra.mxu0 0.0
    %199 = vmatprep.subr.mxu0 0.0
    %200 = vmatpush1.msra.mxu0 0.0
    %201 = vmatprep.subr.mxu0 0.0
    %202 = vmatpush1.msra.mxu0 0.0
    %203 = vmatprep.subr.mxu0 0.0
    %204 = vmatpush1.msra.mxu0 0.0
    %205 = vmatprep.subr.mxu0 0.0
    %206 = vmatpush1.msra.mxu0 0.0
    %207 = vmatprep.subr.mxu0 0.0
    %208 = vmatpush1.msra.mxu0 0.0
    %209 = vmatprep.subr.mxu0 0.0
    %210 = vmatpush1.msra.mxu0 0.0
    %211 = vmatprep.subr.mxu0 0.0
    %212 = vmatpush1.msra.mxu0 0.0
    %213 = vmatprep.subr.mxu0 0.0
    %214 = vmatpush1.msra.mxu0 0.0
    %215 = vmatprep.subr.mxu0 0.0
    %216 = vmatpush1.msra.mxu0 0.0
    %217 = vmatprep.subr.mxu0 0.0
    %218 = vmatpush1.msra.mxu0 0.0
    %219 = vmatprep.subr.mxu0 0.0
    %220 = vmatpush1.msra.mxu0 0.0
    %221 = vmatprep.subr.mxu0 0.0
    %222 = vmatpush1.msra.mxu0 0.0
    %223 = vmatprep.subr.mxu0 0.0
    %224 = vmatpush1.msra.mxu0 0.0
    %225 = vmatprep.subr.mxu0 0.0
    %226 = vmatpush1.msra.mxu0 0.0
    %227 = vmatprep.subr.mxu0 0.0
    %228 = vmatpush1.msra.mxu0 0.0
    %229 = vmatprep.subr.mxu0 0.0
    %230 = vmatpush1.msra.mxu0 0.0
    %231 = vmatprep.subr.mxu0 0.0
    %232 = vmatpush1.msra.mxu0 0.0
    %233 = vmatprep.subr.mxu0 0.0
    %234 = vmatpush1.msra.mxu0 0.0
    %235 = vmatprep.mubr.f32.mxu0 0.0
    %v236 = vand.u32 %v35, 4294901760
    %237 = vmatmul.mubr.f32.gmra.mrb[0].mxu0 %v236
    %v238 = vpop.f32.mrb[0].mxu0
    %v239 = vadd.f32 %v123, %v238
    %v240 = vpop.f32.mrb[0].mxu0
    %241 = vmatprep.mubr.f32.mxu0 0.0
    %v242 = vand.u32 %v38, 4294901760
    %243 = vmatmul.mubr.f32.gmra.mrb[0].mxu0 %v242
    %v244 = vpop.f32.mrb[0].mxu0
    %v245 = vadd.f32 %v133, %v244
    %v246 = vpop.f32.mrb[0].mxu0
    %247 = vdwg.mxu0
    %248 = vmatprep.subr.mxu0 0.0
    %v249 = vand.u32 %v26, 4294901760
    %v250 = vsub.f32 %v26, %v249
    %251 = vmatpush1.msra.mxu0 %v250
    %252 = vmatprep.subr.mxu0 0.0
    %v253 = vand.u32 %v27, 4294901760
    %v254 = vsub.f32 %v27, %v253
    %255 = vmatpush1.msra.mxu0 %v254
    %256 = vmatprep.subr.mxu0 0.0
    %v257 = vand.u32 %v28, 4294901760
    %v258 = vsub.f32 %v28, %v257
    %259 = vmatpush1.msra.mxu0 %v258
    %260 = vmatprep.subr.mxu0 0.0
    %v261 = vand.u32 %v29, 4294901760
    %v262 = vsub.f32 %v29, %v261
    %263 = vmatpush1.msra.mxu0 %v262
    %264 = vmatprep.subr.mxu0 0.0
    %v265 = vand.u32 %v30, 4294901760
    %v266 = vsub.f32 %v30, %v265
    %267 = vmatpush1.msra.mxu0 %v266
    %268 = vmatprep.subr.mxu0 0.0
    %v269 = vand.u32 %v31, 4294901760
    %v270 = vsub.f32 %v31, %v269
    %271 = vmatpush1.msra.mxu0 %v270
    %272 = vmatprep.subr.mxu0 0.0
    %v273 = vand.u32 %v42, 4294901760
    %v274 = vsub.f32 %v42, %v273
    %275 = vmatpush1.msra.mxu0 %v274
    %276 = vmatprep.subr.mxu0 0.0
    %277 = vmatpush1.msra.mxu0 0.0
    %278 = vmatprep.subr.mxu0 0.0
    %279 = vmatpush1.msra.mxu0 0.0
    %280 = vmatprep.subr.mxu0 0.0
    %281 = vmatpush1.msra.mxu0 0.0
    %282 = vmatprep.subr.mxu0 0.0
    %283 = vmatpush1.msra.mxu0 0.0
    %284 = vmatprep.subr.mxu0 0.0
    %285 = vmatpush1.msra.mxu0 0.0
    %286 = vmatprep.subr.mxu0 0.0
    %287 = vmatpush1.msra.mxu0 0.0
    %288 = vmatprep.subr.mxu0 0.0
    %289 = vmatpush1.msra.mxu0 0.0
    %290 = vmatprep.subr.mxu0 0.0
    %291 = vmatpush1.msra.mxu0 0.0
    %292 = vmatprep.subr.mxu0 0.0
    %293 = vmatpush1.msra.mxu0 0.0
    %294 = vmatprep.subr.mxu0 0.0
    %295 = vmatpush1.msra.mxu0 0.0
    %296 = vmatprep.subr.mxu0 0.0
    %297 = vmatpush1.msra.mxu0 0.0
    %298 = vmatprep.subr.mxu0 0.0
    %299 = vmatpush1.msra.mxu0 0.0
    %300 = vmatprep.subr.mxu0 0.0
    %301 = vmatpush1.msra.mxu0 0.0
    %302 = vmatprep.subr.mxu0 0.0
    %303 = vmatpush1.msra.mxu0 0.0
    %304 = vmatprep.subr.mxu0 0.0
    %305 = vmatpush1.msra.mxu0 0.0
    %306 = vmatprep.subr.mxu0 0.0
    %307 = vmatpush1.msra.mxu0 0.0
    %308 = vmatprep.subr.mxu0 0.0
    %309 = vmatpush1.msra.mxu0 0.0
    %310 = vmatprep.subr.mxu0 0.0
    %311 = vmatpush1.msra.mxu0 0.0
    %312 = vmatprep.subr.mxu0 0.0
    %313 = vmatpush1.msra.mxu0 0.0
    %314 = vmatprep.subr.mxu0 0.0
    %315 = vmatpush1.msra.mxu0 0.0
    %316 = vmatprep.subr.mxu0 0.0
    %317 = vmatpush1.msra.mxu0 0.0
    %318 = vmatprep.subr.mxu0 0.0
    %319 = vmatpush1.msra.mxu0 0.0
    %320 = vmatprep.subr.mxu0 0.0
    %321 = vmatpush1.msra.mxu0 0.0
    %322 = vmatprep.subr.mxu0 0.0
    %323 = vmatpush1.msra.mxu0 0.0
    %324 = vmatprep.subr.mxu0 0.0
    %325 = vmatpush1.msra.mxu0 0.0
    %326 = vmatprep.mubr.f32.mxu0 0.0
    %v327 = vand.u32 %v35, 4294901760
    %v328 = vsub.f32 %v35, %v327
    %329 = vmatmul.mubr.f32.gmra.mrb[0].mxu0 %v328
    %v330 = vpop.f32.mrb[0].mxu0
    %v331 = vadd.f32 %v239, %v330
    %v332 = vpop.f32.mrb[0].mxu0
    %333 = vmatprep.mubr.f32.mxu0 0.0
    %v334 = vand.u32 %v38, 4294901760
    %v335 = vsub.f32 %v38, %v334
    %336 = vmatmul.mubr.f32.gmra.mrb[0].mxu0 %v335
    %v337 = vpop.f32.mrb[0].mxu0
    %v338 = vadd.f32 %v245, %v337
    %v339 = vpop.f32.mrb[0].mxu0
    %340 = vdwg.mxu0
    %341 = vmatprep.subr.mxu0 0.0
    %v342 = vand.u32 %v26, 4294901760
    %343 = vmatpush1.msra.mxu0 %v342
    %344 = vmatprep.subr.mxu0 0.0
    %v345 = vand.u32 %v27, 4294901760
    %346 = vmatpush1.msra.mxu0 %v345
    %347 = vmatprep.subr.mxu0 0.0
    %v348 = vand.u32 %v28, 4294901760
    %349 = vmatpush1.msra.mxu0 %v348
    %350 = vmatprep.subr.mxu0 0.0
    %v351 = vand.u32 %v29, 4294901760
    %352 = vmatpush1.msra.mxu0 %v351
    %353 = vmatprep.subr.mxu0 0.0
    %v354 = vand.u32 %v30, 4294901760
    %355 = vmatpush1.msra.mxu0 %v354
    %356 = vmatprep.subr.mxu0 0.0
    %v357 = vand.u32 %v31, 4294901760
    %358 = vmatpush1.msra.mxu0 %v357
    %359 = vmatprep.subr.mxu0 0.0
    %v360 = vand.u32 %v42, 4294901760
    %361 = vmatpush1.msra.mxu0 %v360
    %362 = vmatprep.subr.mxu0 0.0
    %363 = vmatpush1.msra.mxu0 0.0
    %364 = vmatprep.subr.mxu0 0.0
    %365 = vmatpush1.msra.mxu0 0.0
    %366 = vmatprep.subr.mxu0 0.0
    %367 = vmatpush1.msra.mxu0 0.0
    %368 = vmatprep.subr.mxu0 0.0
    %369 = vmatpush1.msra.mxu0 0.0
    %370 = vmatprep.subr.mxu0 0.0
    %371 = vmatpush1.msra.mxu0 0.0
    %372 = vmatprep.subr.mxu0 0.0
    %373 = vmatpush1.msra.mxu0 0.0
    %374 = vmatprep.subr.mxu0 0.0
    %375 = vmatpush1.msra.mxu0 0.0
    %376 = vmatprep.subr.mxu0 0.0
    %377 = vmatpush1.msra.mxu0 0.0
    %378 = vmatprep.subr.mxu0 0.0
    %379 = vmatpush1.msra.mxu0 0.0
    %380 = vmatprep.subr.mxu0 0.0
    %381 = vmatpush1.msra.mxu0 0.0
    %382 = vmatprep.subr.mxu0 0.0
    %383 = vmatpush1.msra.mxu0 0.0
    %384 = vmatprep.subr.mxu0 0.0
    %385 = vmatpush1.msra.mxu0 0.0
    %386 = vmatprep.subr.mxu0 0.0
    %387 = vmatpush1.msra.mxu0 0.0
    %388 = vmatprep.subr.mxu0 0.0
    %389 = vmatpush1.msra.mxu0 0.0
    %390 = vmatprep.subr.mxu0 0.0
    %391 = vmatpush1.msra.mxu0 0.0
    %392 = vmatprep.subr.mxu0 0.0
    %393 = vmatpush1.msra.mxu0 0.0
    %394 = vmatprep.subr.mxu0 0.0
    %395 = vmatpush1.msra.mxu0 0.0
    %396 = vmatprep.subr.mxu0 0.0
    %397 = vmatpush1.msra.mxu0 0.0
    %398 = vmatprep.subr.mxu0 0.0
    %399 = vmatpush1.msra.mxu0 0.0
    %400 = vmatprep.subr.mxu0 0.0
    %401 = vmatpush1.msra.mxu0 0.0
    %402 = vmatprep.subr.mxu0 0.0
    %403 = vmatpush1.msra.mxu0 0.0
    %404 = vmatprep.subr.mxu0 0.0
    %405 = vmatpush1.msra.mxu0 0.0
    %406 = vmatprep.subr.mxu0 0.0
    %407 = vmatpush1.msra.mxu0 0.0
    %408 = vmatprep.subr.mxu0 0.0
    %409 = vmatpush1.msra.mxu0 0.0
    %410 = vmatprep.subr.mxu0 0.0
    %411 = vmatpush1.msra.mxu0 0.0
    %412 = vmatprep.mubr.f32.mxu0 0.0
    %v413 = vand.u32 %v35, 4294901760
    %v414 = vsub.f32 %v35, %v413
    %v415 = vand.u32 %v414, 4294901760
    %416 = vmatmul.mubr.f32.gmra.mrb[0].mxu0 %v415
    %v417 = vpop.f32.mrb[0].mxu0
    %v418 = vadd.f32 %v331, %v417
    %v419 = vpop.f32.mrb[0].mxu0
    %420 = vmatprep.mubr.f32.mxu0 0.0
    %v421 = vand.u32 %v38, 4294901760
    %v422 = vsub.f32 %v38, %v421
    %v423 = vand.u32 %v422, 4294901760
    %424 = vmatmul.mubr.f32.gmra.mrb[0].mxu0 %v423
    %v425 = vpop.f32.mrb[0].mxu0
    %v426 = vadd.f32 %v338, %v425
    %v427 = vpop.f32.mrb[0].mxu0
    %428 = vdwg.mxu0
    %429 = vmatprep.subr.mxu0 0.0
    %v430 = vand.u32 %v26, 4294901760
    %v431 = vsub.f32 %v26, %v430
    %v432 = vand.u32 %v431, 4294901760
    %433 = vmatpush1.msra.mxu0 %v432
    %434 = vmatprep.subr.mxu0 0.0
    %v435 = vand.u32 %v27, 4294901760
    %v436 = vsub.f32 %v27, %v435
    %v437 = vand.u32 %v436, 4294901760
    %438 = vmatpush1.msra.mxu0 %v437
    %439 = vmatprep.subr.mxu0 0.0
    %v440 = vand.u32 %v28, 4294901760
    %v441 = vsub.f32 %v28, %v440
    %v442 = vand.u32 %v441, 4294901760
    %443 = vmatpush1.msra.mxu0 %v442
    %444 = vmatprep.subr.mxu0 0.0
    %v445 = vand.u32 %v29, 4294901760
    %v446 = vsub.f32 %v29, %v445
    %v447 = vand.u32 %v446, 4294901760
    %448 = vmatpush1.msra.mxu0 %v447
    %449 = vmatprep.subr.mxu0 0.0
    %v450 = vand.u32 %v30, 4294901760
    %v451 = vsub.f32 %v30, %v450
    %v452 = vand.u32 %v451, 4294901760
    %453 = vmatpush1.msra.mxu0 %v452
    %454 = vmatprep.subr.mxu0 0.0
    %v455 = vand.u32 %v31, 4294901760
    %v456 = vsub.f32 %v31, %v455
    %v457 = vand.u32 %v456, 4294901760
    %458 = vmatpush1.msra.mxu0 %v457
    %459 = vmatprep.subr.mxu0 0.0
    %v460 = vand.u32 %v42, 4294901760
    %v461 = vsub.f32 %v42, %v460
    %v462 = vand.u32 %v461, 4294901760
    %463 = vmatpush1.msra.mxu0 %v462
    %464 = vmatprep.subr.mxu0 0.0
    %465 = vmatpush1.msra.mxu0 0.0
    %466 = vmatprep.subr.mxu0 0.0
    %467 = vmatpush1.msra.mxu0 0.0
    %468 = vmatprep.subr.mxu0 0.0
    %469 = vmatpush1.msra.mxu0 0.0
    %470 = vmatprep.subr.mxu0 0.0
    %471 = vmatpush1.msra.mxu0 0.0
    %472 = vmatprep.subr.mxu0 0.0
    %473 = vmatpush1.msra.mxu0 0.0
    %474 = vmatprep.subr.mxu0 0.0
    %475 = vmatpush1.msra.mxu0 0.0
    %476 = vmatprep.subr.mxu0 0.0
    %477 = vmatpush1.msra.mxu0 0.0
    %478 = vmatprep.subr.mxu0 0.0
    %479 = vmatpush1.msra.mxu0 0.0
    %480 = vmatprep.subr.mxu0 0.0
    %481 = vmatpush1.msra.mxu0 0.0
    %482 = vmatprep.subr.mxu0 0.0
    %483 = vmatpush1.msra.mxu0 0.0
    %484 = vmatprep.subr.mxu0 0.0
    %485 = vmatpush1.msra.mxu0 0.0
    %486 = vmatprep.subr.mxu0 0.0
    %487 = vmatpush1.msra.mxu0 0.0
    %488 = vmatprep.subr.mxu0 0.0
    %489 = vmatpush1.msra.mxu0 0.0
    %490 = vmatprep.subr.mxu0 0.0
    %491 = vmatpush1.msra.mxu0 0.0
    %492 = vmatprep.subr.mxu0 0.0
    %493 = vmatpush1.msra.mxu0 0.0
    %494 = vmatprep.subr.mxu0 0.0
    %495 = vmatpush1.msra.mxu0 0.0
    %496 = vmatprep.subr.mxu0 0.0
    %497 = vmatpush1.msra.mxu0 0.0
    %498 = vmatprep.subr.mxu0 0.0
    %499 = vmatpush1.msra.mxu0 0.0
    %500 = vmatprep.subr.mxu0 0.0
    %501 = vmatpush1.msra.mxu0 0.0
    %502 = vmatprep.subr.mxu0 0.0
    %503 = vmatpush1.msra.mxu0 0.0
    %504 = vmatprep.subr.mxu0 0.0
    %505 = vmatpush1.msra.mxu0 0.0
    %506 = vmatprep.subr.mxu0 0.0
    %507 = vmatpush1.msra.mxu0 0.0
    %508 = vmatprep.subr.mxu0 0.0
    %509 = vmatpush1.msra.mxu0 0.0
    %510 = vmatprep.subr.mxu0 0.0
    %511 = vmatpush1.msra.mxu0 0.0
    %512 = vmatprep.subr.mxu0 0.0
    %513 = vmatpush1.msra.mxu0 0.0
    %514 = vmatprep.mubr.f32.mxu0 0.0
    %v515 = vand.u32 %v35, 4294901760
    %516 = vmatmul.mubr.f32.gmra.mrb[0].mxu0 %v515
    %v517 = vpop.f32.mrb[0].mxu0
    %v518 = vadd.f32 %v418, %v517
    %v519 = vpop.f32.mrb[0].mxu0
    %520 = vmatprep.mubr.f32.mxu0 0.0
    %v521 = vand.u32 %v38, 4294901760
    %522 = vmatmul.mubr.f32.gmra.mrb[0].mxu0 %v521
    %v523 = vpop.f32.mrb[0].mxu0
    %v524 = vadd.f32 %v426, %v523
    %v525 = vpop.f32.mrb[0].mxu0
    %526 = vdwg.mxu0
    %527 = vmatprep.subr.mxu0 0.0
    %v528 = vand.u32 %v26, 4294901760
    %529 = vmatpush1.msra.mxu0 %v528
    %530 = vmatprep.subr.mxu0 0.0
    %v531 = vand.u32 %v27, 4294901760
    %532 = vmatpush1.msra.mxu0 %v531
    %533 = vmatprep.subr.mxu0 0.0
    %v534 = vand.u32 %v28, 4294901760
    %535 = vmatpush1.msra.mxu0 %v534
    %536 = vmatprep.subr.mxu0 0.0
    %v537 = vand.u32 %v29, 4294901760
    %538 = vmatpush1.msra.mxu0 %v537
    %539 = vmatprep.subr.mxu0 0.0
    %v540 = vand.u32 %v30, 4294901760
    %541 = vmatpush1.msra.mxu0 %v540
    %542 = vmatprep.subr.mxu0 0.0
    %v543 = vand.u32 %v31, 4294901760
    %544 = vmatpush1.msra.mxu0 %v543
    %545 = vmatprep.subr.mxu0 0.0
    %v546 = vand.u32 %v42, 4294901760
    %547 = vmatpush1.msra.mxu0 %v546
    %548 = vmatprep.subr.mxu0 0.0
    %549 = vmatpush1.msra.mxu0 0.0
    %550 = vmatprep.subr.mxu0 0.0
    %551 = vmatpush1.msra.mxu0 0.0
    %552 = vmatprep.subr.mxu0 0.0
    %553 = vmatpush1.msra.mxu0 0.0
    %554 = vmatprep.subr.mxu0 0.0
    %555 = vmatpush1.msra.mxu0 0.0
    %556 = vmatprep.subr.mxu0 0.0
    %557 = vmatpush1.msra.mxu0 0.0
    %558 = vmatprep.subr.mxu0 0.0
    %559 = vmatpush1.msra.mxu0 0.0
    %560 = vmatprep.subr.mxu0 0.0
    %561 = vmatpush1.msra.mxu0 0.0
    %562 = vmatprep.subr.mxu0 0.0
    %563 = vmatpush1.msra.mxu0 0.0
    %564 = vmatprep.subr.mxu0 0.0
    %565 = vmatpush1.msra.mxu0 0.0
    %566 = vmatprep.subr.mxu0 0.0
    %567 = vmatpush1.msra.mxu0 0.0
    %568 = vmatprep.subr.mxu0 0.0
    %569 = vmatpush1.msra.mxu0 0.0
    %570 = vmatprep.subr.mxu0 0.0
    %571 = vmatpush1.msra.mxu0 0.0
    %572 = vmatprep.subr.mxu0 0.0
    %573 = vmatpush1.msra.mxu0 0.0
    %574 = vmatprep.subr.mxu0 0.0
    %575 = vmatpush1.msra.mxu0 0.0
    %576 = vmatprep.subr.mxu0 0.0
    %577 = vmatpush1.msra.mxu0 0.0
    %578 = vmatprep.subr.mxu0 0.0
    %579 = vmatpush1.msra.mxu0 0.0
    %580 = vmatprep.subr.mxu0 0.0
    %581 = vmatpush1.msra.mxu0 0.0
    %582 = vmatprep.subr.mxu0 0.0
    %583 = vmatpush1.msra.mxu0 0.0
    %584 = vmatprep.subr.mxu0 0.0
    %585 = vmatpush1.msra.mxu0 0.0
    %586 = vmatprep.subr.mxu0 0.0
    %587 = vmatpush1.msra.mxu0 0.0
    %588 = vmatprep.subr.mxu0 0.0
    %589 = vmatpush1.msra.mxu0 0.0
    %590 = vmatprep.subr.mxu0 0.0
    %591 = vmatpush1.msra.mxu0 0.0
    %592 = vmatprep.subr.mxu0 0.0
    %593 = vmatpush1.msra.mxu0 0.0
    %594 = vmatprep.subr.mxu0 0.0
    %595 = vmatpush1.msra.mxu0 0.0
    %596 = vmatprep.subr.mxu0 0.0
    %597 = vmatpush1.msra.mxu0 0.0
    %598 = vmatprep.mubr.f32.mxu0 0.0
    %v599 = vand.u32 %v35, 4294901760
    %600 = vmatmul.mubr.f32.gmra.mrb[0].mxu0 %v599
    %v601 = vpop.f32.mrb[0].mxu0
    %v602 = vadd.f32 %v518, %v601
    %v603 = vpop.f32.mrb[0].mxu0
    %604 = vmatprep.mubr.f32.mxu0 0.0
    %v605 = vand.u32 %v38, 4294901760
    %606 = vmatmul.mubr.f32.gmra.mrb[0].mxu0 %v605
    %v607 = vpop.f32.mrb[0].mxu0
    %v608 = vadd.f32 %v524, %v607
    %v609 = vpop.f32.mrb[0].mxu0
    %610 = vdwg.mxu0
    %v611 = vmul.f32 %v602, 5.656854
    %v612 = vmul.f32 %v608, 5.656854
    %vm613 = vcmask 261120
    %614 = vst.msk [vmem:[#allocation2] sm:$0xff] %vm613, %v611
    %615 = vst.msk [vmem:[#allocation2 + $0x8] sm:$0xff] %vm613, %v612
    // Predicated region
    $region10: #{tpu_custom_call.1} parent=1 // pred_check
      _
    $region11: #{tpu_custom_call.1} parent=1 // pred_check_branch
      %617 = sbr.rel (0) target = $region13
    $region12: #{tpu_custom_call.1} parent=1 // pred_region
      %s619 = ssub.s32 256, 256
      %620 = vsyncadd [#allocation3], %s619
      %s621 = sshll.u32 [#allocation2], 4
      %s622 = int_to_ptr.vmem [resolvable:$true] %s621
      %627 = dma.vmem_to_hbm [thread:$0]  %s622, 256, %s2, [#allocation3], 128, 128, 8
    $region13: #{tpu_custom_call.1} parent=1 // pred_fallthru
      _
    // Predicated region
    $region14: #{tpu_custom_call.1} parent=1 // pred_check
      _
    $region15: #{tpu_custom_call.1} parent=1 // pred_check_branch
      %629 = sbr.rel (0) target = $region17
    $region16: #{tpu_custom_call.1} parent=1 // pred_region
      %630 = dma.done [#allocation3], 256
    $region17: #{tpu_custom_call.1} parent=1 // pred_fallthru
      _
    %631 = vsyncpa [#allocation3], 1

</llo_original>
